<compile_context>
chip_gen: v7x
topology: tpu7x:2x2x1
jax: 0.10.0
libtpu: 0.0.40
codegen_flags: <defaults>
</compile_context>

<pallas_src>
import functools

import jax
import jax.numpy as jnp
from jax.experimental import pallas as pl
from jax.experimental.pallas import tpu as pltpu

MiB = 1024 * 1024


def _round_up(x, m):
    return ((x + m - 1) // m) * m


def _round_down(x, m):
    return (x // m) * m


def _largest_divisor_leq(n, k):
    k = max(1, min(n, k))
    for d in range(k, 0, -1):
        if n % d == 0:
            return d
    return 1


def _vmem_capacity_bytes():
    try:
        return int(pltpu.get_tpu_info().vmem_capacity_bytes)
    except Exception:
        return 64 * MiB  # conservative (v7x per-TC) if query unavailable


def _budgets():
    """Generation-aware (vmem_limit_bytes cap, per-slab byte target)."""
    cap = _vmem_capacity_bytes()
    if cap >= 96 * MiB:          # v5e / v6e: 128 MiB physical VMEM
        return 96 * MiB, 4 * MiB
    return 40 * MiB, 2 * MiB     # v7x: 64 MiB physical per TensorCore


# ----------------------------------------------------------------------------
# Kernels
# ----------------------------------------------------------------------------
def _conv1x1_vpu_kernel(c, w_ref, x_ref, o_ref):
    # Small-C path.  w_ref: (C, C) f32 in SMEM (scalar reads);
    # x_ref/o_ref: (nb, C, tile_s, 128) with spatial on sublanes AND lanes.
    # Fully unrolled FMA loop -> 4 VALU slots, huge headroom in a mem-bound op.
    for o in range(c):
        acc = x_ref[:, 0].astype(jnp.float32) * w_ref[o, 0]
        for ci in range(1, c):
            acc = acc + x_ref[:, ci].astype(jnp.float32) * w_ref[o, ci]
        o_ref[:, o] = acc.astype(o_ref.dtype)


def _conv1x1_mxu_kernel(nb, w_ref, x_ref, o_ref):
    # General path.  w_ref: (C, C) resident VMEM weight;
    # x_ref/o_ref: (nb, C, tile) slabs, spatial on lanes (lane-dense stores).
    w = w_ref[...]
    for b in range(nb):
        o_ref[b] = jnp.dot(
            w, x_ref[b], preferred_element_type=jnp.float32
        ).astype(o_ref.dtype)


# ----------------------------------------------------------------------------
# pallas_call wrappers
# ----------------------------------------------------------------------------
def _conv1x1_small_c(x_view, w, *, vmem_budget, target_slab):
    n, c, hw = x_view.shape
    itemsize = jnp.dtype(x_view.dtype).itemsize
    s_total = hw // 128
    x4 = x_view.reshape(n, c, s_total, 128)  # free view

    # Spatial tile (in 128-lane rows): aim for ~target_slab bytes per slab.
    bytes_per_srow = c * 128 * itemsize
    tile_s = target_slab // bytes_per_srow
    if tile_s >= s_total:
        tile_s = s_total                      # full extent (any size allowed)
    else:
        tile_s = max(8, _round_down(tile_s, 8))   # (8,128) sublane rule
        tile_s = min(tile_s, s_total)
    num_s = pl.cdiv(s_total, tile_s)

    # Batch-block several images per step when one image is too small.
    nb = 1
    slab_one = c * min(tile_s, s_total) * 128 * itemsize
    if num_s == 1 and n > 1 and slab_one < target_slab:
        nb = _largest_divisor_leq(n, max(1, target_slab // max(slab_one, 1)))
    num_b = pl.cdiv(n, nb)

    # Keep >= 2 parallel grid steps (v7x has 2 TensorCores sharing HBM).
    if num_b * num_s < 2:
        if n >= 2:
            nb = _largest_divisor_leq(n, n // 2)
            num_b = pl.cdiv(n, nb)
        elif s_total >= 16:
            tile_s = max(8, _round_down(pl.cdiv(s_total, 2), 8))
            num_s = pl.cdiv(s_total, tile_s)

    # VMEM accounting with sublane padding (tile_s pads to a multiple of 8).
    tile_s_pad = _round_up(min(tile_s, s_total), 8)
    slab_bytes = nb * c * tile_s_pad * 128 * itemsize
    vmem_needed = 2 * 2 * slab_bytes              # double-buffered in + out
    vmem_limit = int(min(vmem_budget, max(2 * vmem_needed, 32 * MiB)))

    m_total = n * hw
    cost = pl.CostEstimate(
        flops=2 * c * c * m_total,
        transcendentals=0,
        bytes_accessed=2 * c * m_total * itemsize + c * c * 4,
    )

    out = pl.pallas_call(
        functools.partial(_conv1x1_vpu_kernel, c),
        out_shape=jax.ShapeDtypeStruct((n, c, s_total, 128), x_view.dtype),
        grid_spec=pltpu.PrefetchScalarGridSpec(
            num_scalar_prefetch=0,
            grid=(num_b, num_s),
            in_specs=[
                # (C, C) weight scalars live in SMEM for scalar*vector FMAs.
                pl.BlockSpec(memory_space=pltpu.MemorySpace.SMEM),
                pl.BlockSpec((nb, c, tile_s, 128), lambda b, s: (b, 0, s, 0)),
            ],
            out_specs=pl.BlockSpec(
                (nb, c, tile_s, 128), lambda b, s: (b, 0, s, 0)
            ),
        ),
        compiler_params=pltpu.CompilerParams(
            dimension_semantics=("parallel", "parallel"),
            vmem_limit_bytes=vmem_limit,
        ),
        cost_estimate=cost,
    )(w, x4)
    return out.reshape(n, c, hw)


def _conv1x1_mxu(x_view, w, *, vmem_budget, target_slab):
    n, c, hw = x_view.shape
    itemsize = jnp.dtype(x_view.dtype).itemsize
    sublane = 32 // itemsize                  # 8 for f32, 16 for bf16
    c_pad = _round_up(c, sublane)

    # Byte-targeted lane tile (multiple of 128, <= hw).
    tile = _round_down(target_slab // (c_pad * itemsize), 128)
    tile = max(128, tile)
    tile = min(tile, hw)
    num_s = pl.cdiv(hw, tile)

    # Batch-block when a full image slab is still below the byte target.
    nb = 1
    slab_one = c_pad * tile * itemsize
    if num_s == 1 and n > 1 and slab_one < target_slab:
        nb = _largest_divisor_leq(n, max(1, target_slab // max(slab_one, 1)))
    num_b = pl.cdiv(n, nb)

    # Keep >= 2 parallel grid steps for v7x's two TensorCores.
    if num_b * num_s < 2:
        if n >= 2:
            nb = _largest_divisor_leq(n, n // 2)
            num_b = pl.cdiv(n, nb)
        elif hw >= 256:
            tile = _round_up(pl.cdiv(hw, 2), 128)
            num_s = pl.cdiv(hw, tile)

    # VMEM accounting incl. sublane padding and the (8,128)-tiled weight.
    slab_bytes = nb * c_pad * tile * itemsize
    w_bytes = _round_up(c, 8) * _round_up(c, 128) * 4
    vmem_needed = 2 * 2 * slab_bytes + 2 * w_bytes
    vmem_limit = int(min(vmem_budget, max(2 * vmem_needed, 32 * MiB)))

    m_total = n * hw
    cost = pl.CostEstimate(
        flops=2 * c * c * m_total,
        transcendentals=0,
        bytes_accessed=2 * c * m_total * itemsize + c * c * 4,
    )

    return pl.pallas_call(
        functools.partial(_conv1x1_mxu_kernel, nb),
        out_shape=jax.ShapeDtypeStruct((n, c, hw), x_view.dtype),
        grid_spec=pltpu.PrefetchScalarGridSpec(
            num_scalar_prefetch=0,
            grid=(num_b, num_s),
            in_specs=[
                pl.BlockSpec((c, c), lambda b, i: (0, 0)),     # resident weight
                pl.BlockSpec((nb, c, tile), lambda b, i: (b, 0, i)),
            ],
            out_specs=pl.BlockSpec((nb, c, tile), lambda b, i: (b, 0, i)),
        ),
        compiler_params=pltpu.CompilerParams(
            dimension_semantics=("parallel", "parallel"),
            vmem_limit_bytes=vmem_limit,
        ),
        cost_estimate=cost,
    )(w, x_view)


def conv1x1_pallas(x_view, w):
    """x_view: (N, C, HW) with HW % 128 == 0; w: (C, C). Returns (N, C, HW)."""
    n, c, hw = x_view.shape
    assert hw % 128 == 0
    itemsize = jnp.dtype(x_view.dtype).itemsize
    sublane = 32 // itemsize
    vmem_budget, target_slab = _budgets()
    # TODO(synk): if the model tolerates bf16 activations, carrying x/y as
    # bf16 through this op halves HBM traffic (weight/accum stay f32).
    if c <= sublane:
        return _conv1x1_small_c(
            x_view, w, vmem_budget=vmem_budget, target_slab=target_slab
        )
    return _conv1x1_mxu(
        x_view, w, vmem_budget=vmem_budget, target_slab=target_slab
    )


def _conv1x1_nchw(x, w):
    """1x1 conv (channel mix) on NCHW via the Pallas kernel; pads HW to 128."""
    n, c, h, wd = x.shape
    hw = h * wd
    hw_pad = _round_up(hw, 128)
    xv = x.reshape(n, c, hw)                  # free view, no HBM transpose
    if hw_pad != hw:
        xv = jnp.pad(xv, ((0, 0), (0, 0), (0, hw_pad - hw)))
    yv = conv1x1_pallas(xv, w)
    if hw_pad != hw:
        yv = yv[:, :, :hw]
    return yv.reshape(n, c, h, wd)


# ----------------------------------------------------------------------------
# Module-level API mirroring the PyTorch InvertibleConvolution
# ----------------------------------------------------------------------------
def init_invertible_conv_weight(channels, key):
    """Mirror of __init__: random normal -> QR -> orthogonal (C, C) weight."""
    w_init = jax.random.normal(key, (channels, channels), dtype=jnp.float32)
    q, _ = jnp.linalg.qr(w_init)
    return q.astype(jnp.float32)


@jax.jit
def invertible_convolution_forward(x, w, logdet):
    """Forward (reverse=False): y = conv1x1(x, W), logdet += H*W*slogdet(W)."""
    n, c, h, wd = x.shape
    y = _conv1x1_nchw(x, w)
    detw = jnp.linalg.slogdet(w)[1]           # tiny CxC scalar glue, plain JAX
    return y, logdet + h * wd * detw


@jax.jit
def invertible_convolution_reverse(x, w):
    """Reverse: conv1x1 with W^-1 (LU solve), reusing the same kernel."""
    c = w.shape[0]
    # TODO(synk): PyTorch inverts in float64; x64 is disabled here so we use a
    # f32 LU-based solve (more stable than jnp.linalg.inv) for the tiny CxC.
    inv_w = jnp.linalg.solve(w, jnp.eye(c, dtype=w.dtype))
    return _conv1x1_nchw(x, inv_w)


if __name__ == "__main__":
    key = jax.random.PRNGKey(0)
    k_w, k_x, k_w2, k_x2 = jax.random.split(key, 4)

    # --- Case 1: Glow-typical tiny channel count -> small-C VPU path -------
    N, C, H, W = 2, 4, 16, 16
    w = init_invertible_conv_weight(C, k_w)
    x = jax.random.normal(k_x, (N, C, H, W), dtype=jnp.float32)
    logdet = jnp.zeros((N,), dtype=jnp.float32)

    y, logdet_out = invertible_convolution_forward(x, w, logdet)
    jax.block_until_ready((y, logdet_out))

    y_ref = jnp.einsum("oc,nchw->nohw", w, x,
                       precision=jax.lax.Precision.HIGHEST)
    logdet_ref = logdet + H * W * jnp.linalg.slogdet(w)[1]
    assert jnp.allclose(y, y_ref, atol=1e-5, rtol=1e-5)
    assert jnp.allclose(logdet_out, logdet_ref, atol=1e-5, rtol=1e-5)

    x_rec = invertible_convolution_reverse(y, w)
    jax.block_until_ready(x_rec)
    assert not bool(jnp.isnan(x_rec).any()), "nan after 1x1 conv in reverse"
    assert not bool(jnp.isinf(x_rec).any()), "inf after 1x1 conv in reverse"
    assert jnp.allclose(x_rec, x, atol=1e-4, rtol=1e-4)

    # --- Case 2: larger C + non-128-aligned spatial -> MXU path + padding ---
    N2, C2, H2, W2 = 3, 16, 12, 12
    w2 = init_invertible_conv_weight(C2, k_w2)
    x2 = jax.random.normal(k_x2, (N2, C2, H2, W2), dtype=jnp.float32)
    y2, _ = invertible_convolution_forward(
        x2, w2, jnp.zeros((N2,), dtype=jnp.float32))
    jax.block_until_ready(y2)
    y2_ref = jnp.einsum("oc,nchw->nohw", w2, x2,
                        precision=jax.lax.Precision.HIGHEST)
    assert jnp.allclose(y2, y2_ref, atol=1e-5, rtol=1e-5)

    print("KERNEL_OK")
</pallas_src>

<mosaic_0001>
module attributes {stable_mosaic.version = 11 : i64} {
  func.func @_conv1x1_vpu_kernel(%arg0: i32, %arg1: i32, %arg2: memref<4x4xf32, #tpu.memory_space<smem>>, %arg3: memref<1x4x2x128xf32, #tpu.memory_space<vmem>>, %arg4: memref<1x4x2x128xf32, #tpu.memory_space<vmem>>) attributes {dimension_semantics = [#tpu.dimension_semantics<parallel>, #tpu.dimension_semantics<parallel>], iteration_bounds = array<i64: 2, 1>, scalar_prefetch = 0 : i64, scratch_operands = 0 : i64, tpu.core_type = #tpu.core_type<tc>, window_params = [{transform_indices = @transform_0, window_bounds = array<i64: 4, 4>}, {transform_indices = @transform_1, window_bounds = array<i64: 1, 4, 2, 128>}, {transform_indices = @transform_2, window_bounds = array<i64: 1, 4, 2, 128>}]} {
    %c0 = arith.constant 0 : index
    %c0_0 = arith.constant 0 : index
    %c0_1 = arith.constant 0 : index
    %c0_2 = arith.constant 0 : index
    %0 = vector.load %arg3[%c0, %c0_0, %c0_1, %c0_2] : memref<1x4x2x128xf32, #tpu.memory_space<vmem>>, vector<1x1x2x128xf32>
    %1 = vector.shape_cast %0 : vector<1x1x2x128xf32> to vector<1x2x128xf32>
    %c0_3 = arith.constant 0 : index
    %c0_4 = arith.constant 0 : index
    %2 = memref.load %arg2[%c0_3, %c0_4] : memref<4x4xf32, #tpu.memory_space<smem>>
    %3 = vector.broadcast %2 : f32 to vector<1x2x128xf32>
    %4 = arith.mulf %1, %3 : vector<1x2x128xf32>
    %c0_5 = arith.constant 0 : index
    %c1 = arith.constant 1 : index
    %c0_6 = arith.constant 0 : index
    %c0_7 = arith.constant 0 : index
    %5 = vector.load %arg3[%c0_5, %c1, %c0_6, %c0_7] : memref<1x4x2x128xf32, #tpu.memory_space<vmem>>, vector<1x1x2x128xf32>
    %6 = vector.shape_cast %5 : vector<1x1x2x128xf32> to vector<1x2x128xf32>
    %c0_8 = arith.constant 0 : index
    %c1_9 = arith.constant 1 : index
    %7 = memref.load %arg2[%c0_8, %c1_9] : memref<4x4xf32, #tpu.memory_space<smem>>
    %8 = vector.broadcast %7 : f32 to vector<1x2x128xf32>
    %9 = arith.mulf %6, %8 : vector<1x2x128xf32>
    %10 = arith.addf %4, %9 : vector<1x2x128xf32>
    %c0_10 = arith.constant 0 : index
    %c2 = arith.constant 2 : index
    %c0_11 = arith.constant 0 : index
    %c0_12 = arith.constant 0 : index
    %11 = vector.load %arg3[%c0_10, %c2, %c0_11, %c0_12] : memref<1x4x2x128xf32, #tpu.memory_space<vmem>>, vector<1x1x2x128xf32>
    %12 = vector.shape_cast %11 : vector<1x1x2x128xf32> to vector<1x2x128xf32>
    %c0_13 = arith.constant 0 : index
    %c2_14 = arith.constant 2 : index
    %13 = memref.load %arg2[%c0_13, %c2_14] : memref<4x4xf32, #tpu.memory_space<smem>>
    %14 = vector.broadcast %13 : f32 to vector<1x2x128xf32>
    %15 = arith.mulf %12, %14 : vector<1x2x128xf32>
    %16 = arith.addf %10, %15 : vector<1x2x128xf32>
    %c0_15 = arith.constant 0 : index
    %c3 = arith.constant 3 : index
    %c0_16 = arith.constant 0 : index
    %c0_17 = arith.constant 0 : index
    %17 = vector.load %arg3[%c0_15, %c3, %c0_16, %c0_17] : memref<1x4x2x128xf32, #tpu.memory_space<vmem>>, vector<1x1x2x128xf32>
    %18 = vector.shape_cast %17 : vector<1x1x2x128xf32> to vector<1x2x128xf32>
    %c0_18 = arith.constant 0 : index
    %c3_19 = arith.constant 3 : index
    %19 = memref.load %arg2[%c0_18, %c3_19] : memref<4x4xf32, #tpu.memory_space<smem>>
    %20 = vector.broadcast %19 : f32 to vector<1x2x128xf32>
    %21 = arith.mulf %18, %20 : vector<1x2x128xf32>
    %22 = arith.addf %16, %21 : vector<1x2x128xf32>
    %c0_20 = arith.constant 0 : index
    %c0_21 = arith.constant 0 : index
    %c0_22 = arith.constant 0 : index
    %c0_23 = arith.constant 0 : index
    %23 = vector.load %arg4[%c0_20, %c0_21, %c0_22, %c0_23] : memref<1x4x2x128xf32, #tpu.memory_space<vmem>>, vector<1x1x2x128xf32>
    %24 = vector.shape_cast %23 : vector<1x1x2x128xf32> to vector<1x2x128xf32>
    %25 = vector.shape_cast %22 : vector<1x2x128xf32> to vector<1x1x2x128xf32>
    tpu.vector_store %arg4[%c0_20, %c0_21, %c0_22, %c0_23], %25 {strides = array<i32>} : memref<1x4x2x128xf32, #tpu.memory_space<vmem>>, vector<1x1x2x128xf32>,
    %c0_24 = arith.constant 0 : index
    %c0_25 = arith.constant 0 : index
    %c0_26 = arith.constant 0 : index
    %c0_27 = arith.constant 0 : index
    %26 = vector.load %arg3[%c0_24, %c0_25, %c0_26, %c0_27] : memref<1x4x2x128xf32, #tpu.memory_space<vmem>>, vector<1x1x2x128xf32>
    %27 = vector.shape_cast %26 : vector<1x1x2x128xf32> to vector<1x2x128xf32>
    %c1_28 = arith.constant 1 : index
    %c0_29 = arith.constant 0 : index
    %28 = memref.load %arg2[%c1_28, %c0_29] : memref<4x4xf32, #tpu.memory_space<smem>>
    %29 = vector.broadcast %28 : f32 to vector<1x2x128xf32>
    %30 = arith.mulf %27, %29 : vector<1x2x128xf32>
    %c0_30 = arith.constant 0 : index
    %c1_31 = arith.constant 1 : index
    %c0_32 = arith.constant 0 : index
    %c0_33 = arith.constant 0 : index
    %31 = vector.load %arg3[%c0_30, %c1_31, %c0_32, %c0_33] : memref<1x4x2x128xf32, #tpu.memory_space<vmem>>, vector<1x1x2x128xf32>
    %32 = vector.shape_cast %31 : vector<1x1x2x128xf32> to vector<1x2x128xf32>
    %c1_34 = arith.constant 1 : index
    %c1_35 = arith.constant 1 : index
    %33 = memref.load %arg2[%c1_34, %c1_35] : memref<4x4xf32, #tpu.memory_space<smem>>
    %34 = vector.broadcast %33 : f32 to vector<1x2x128xf32>
    %35 = arith.mulf %32, %34 : vector<1x2x128xf32>
    %36 = arith.addf %30, %35 : vector<1x2x128xf32>
    %c0_36 = arith.constant 0 : index
    %c2_37 = arith.constant 2 : index
    %c0_38 = arith.constant 0 : index
    %c0_39 = arith.constant 0 : index
    %37 = vector.load %arg3[%c0_36, %c2_37, %c0_38, %c0_39] : memref<1x4x2x128xf32, #tpu.memory_space<vmem>>, vector<1x1x2x128xf32>
    %38 = vector.shape_cast %37 : vector<1x1x2x128xf32> to vector<1x2x128xf32>
    %c1_40 = arith.constant 1 : index
    %c2_41 = arith.constant 2 : index
    %39 = memref.load %arg2[%c1_40, %c2_41] : memref<4x4xf32, #tpu.memory_space<smem>>
    %40 = vector.broadcast %39 : f32 to vector<1x2x128xf32>
    %41 = arith.mulf %38, %40 : vector<1x2x128xf32>
    %42 = arith.addf %36, %41 : vector<1x2x128xf32>
    %c0_42 = arith.constant 0 : index
    %c3_43 = arith.constant 3 : index
    %c0_44 = arith.constant 0 : index
    %c0_45 = arith.constant 0 : index
    %43 = vector.load %arg3[%c0_42, %c3_43, %c0_44, %c0_45] : memref<1x4x2x128xf32, #tpu.memory_space<vmem>>, vector<1x1x2x128xf32>
    %44 = vector.shape_cast %43 : vector<1x1x2x128xf32> to vector<1x2x128xf32>
    %c1_46 = arith.constant 1 : index
    %c3_47 = arith.constant 3 : index
    %45 = memref.load %arg2[%c1_46, %c3_47] : memref<4x4xf32, #tpu.memory_space<smem>>
    %46 = vector.broadcast %45 : f32 to vector<1x2x128xf32>
    %47 = arith.mulf %44, %46 : vector<1x2x128xf32>
    %48 = arith.addf %42, %47 : vector<1x2x128xf32>
    %c0_48 = arith.constant 0 : index
    %c1_49 = arith.constant 1 : index
    %c0_50 = arith.constant 0 : index
    %c0_51 = arith.constant 0 : index
    %49 = vector.load %arg4[%c0_48, %c1_49, %c0_50, %c0_51] : memref<1x4x2x128xf32, #tpu.memory_space<vmem>>, vector<1x1x2x128xf32>
    %50 = vector.shape_cast %49 : vector<1x1x2x128xf32> to vector<1x2x128xf32>
    %51 = vector.shape_cast %48 : vector<1x2x128xf32> to vector<1x1x2x128xf32>
    tpu.vector_store %arg4[%c0_48, %c1_49, %c0_50, %c0_51], %51 {strides = array<i32>} : memref<1x4x2x128xf32, #tpu.memory_space<vmem>>, vector<1x1x2x128xf32>,
    %c0_52 = arith.constant 0 : index
    %c0_53 = arith.constant 0 : index
    %c0_54 = arith.constant 0 : index
    %c0_55 = arith.constant 0 : index
    %52 = vector.load %arg3[%c0_52, %c0_53, %c0_54, %c0_55] : memref<1x4x2x128xf32, #tpu.memory_space<vmem>>, vector<1x1x2x128xf32>
    %53 = vector.shape_cast %52 : vector<1x1x2x128xf32> to vector<1x2x128xf32>
    %c2_56 = arith.constant 2 : index
    %c0_57 = arith.constant 0 : index
    %54 = memref.load %arg2[%c2_56, %c0_57] : memref<4x4xf32, #tpu.memory_space<smem>>
    %55 = vector.broadcast %54 : f32 to vector<1x2x128xf32>
    %56 = arith.mulf %53, %55 : vector<1x2x128xf32>
    %c0_58 = arith.constant 0 : index
    %c1_59 = arith.constant 1 : index
    %c0_60 = arith.constant 0 : index
    %c0_61 = arith.constant 0 : index
    %57 = vector.load %arg3[%c0_58, %c1_59, %c0_60, %c0_61] : memref<1x4x2x128xf32, #tpu.memory_space<vmem>>, vector<1x1x2x128xf32>
    %58 = vector.shape_cast %57 : vector<1x1x2x128xf32> to vector<1x2x128xf32>
    %c2_62 = arith.constant 2 : index
    %c1_63 = arith.constant 1 : index
    %59 = memref.load %arg2[%c2_62, %c1_63] : memref<4x4xf32, #tpu.memory_space<smem>>
    %60 = vector.broadcast %59 : f32 to vector<1x2x128xf32>
    %61 = arith.mulf %58, %60 : vector<1x2x128xf32>
    %62 = arith.addf %56, %61 : vector<1x2x128xf32>
    %c0_64 = arith.constant 0 : index
    %c2_65 = arith.constant 2 : index
    %c0_66 = arith.constant 0 : index
    %c0_67 = arith.constant 0 : index
    %63 = vector.load %arg3[%c0_64, %c2_65, %c0_66, %c0_67] : memref<1x4x2x128xf32, #tpu.memory_space<vmem>>, vector<1x1x2x128xf32>
    %64 = vector.shape_cast %63 : vector<1x1x2x128xf32> to vector<1x2x128xf32>
    %c2_68 = arith.constant 2 : index
    %c2_69 = arith.constant 2 : index
    %65 = memref.load %arg2[%c2_68, %c2_69] : memref<4x4xf32, #tpu.memory_space<smem>>
    %66 = vector.broadcast %65 : f32 to vector<1x2x128xf32>
    %67 = arith.mulf %64, %66 : vector<1x2x128xf32>
    %68 = arith.addf %62, %67 : vector<1x2x128xf32>
    %c0_70 = arith.constant 0 : index
    %c3_71 = arith.constant 3 : index
    %c0_72 = arith.constant 0 : index
    %c0_73 = arith.constant 0 : index
    %69 = vector.load %arg3[%c0_70, %c3_71, %c0_72, %c0_73] : memref<1x4x2x128xf32, #tpu.memory_space<vmem>>, vector<1x1x2x128xf32>
    %70 = vector.shape_cast %69 : vector<1x1x2x128xf32> to vector<1x2x128xf32>
    %c2_74 = arith.constant 2 : index
    %c3_75 = arith.constant 3 : index
    %71 = memref.load %arg2[%c2_74, %c3_75] : memref<4x4xf32, #tpu.memory_space<smem>>
    %72 = vector.broadcast %71 : f32 to vector<1x2x128xf32>
    %73 = arith.mulf %70, %72 : vector<1x2x128xf32>
    %74 = arith.addf %68, %73 : vector<1x2x128xf32>
    %c0_76 = arith.constant 0 : index
    %c2_77 = arith.constant 2 : index
    %c0_78 = arith.constant 0 : index
    %c0_79 = arith.constant 0 : index
    %75 = vector.load %arg4[%c0_76, %c2_77, %c0_78, %c0_79] : memref<1x4x2x128xf32, #tpu.memory_space<vmem>>, vector<1x1x2x128xf32>
    %76 = vector.shape_cast %75 : vector<1x1x2x128xf32> to vector<1x2x128xf32>
    %77 = vector.shape_cast %74 : vector<1x2x128xf32> to vector<1x1x2x128xf32>
    tpu.vector_store %arg4[%c0_76, %c2_77, %c0_78, %c0_79], %77 {strides = array<i32>} : memref<1x4x2x128xf32, #tpu.memory_space<vmem>>, vector<1x1x2x128xf32>,
    %c0_80 = arith.constant 0 : index
    %c0_81 = arith.constant 0 : index
    %c0_82 = arith.constant 0 : index
    %c0_83 = arith.constant 0 : index
    %78 = vector.load %arg3[%c0_80, %c0_81, %c0_82, %c0_83] : memref<1x4x2x128xf32, #tpu.memory_space<vmem>>, vector<1x1x2x128xf32>
    %79 = vector.shape_cast %78 : vector<1x1x2x128xf32> to vector<1x2x128xf32>
    %c3_84 = arith.constant 3 : index
    %c0_85 = arith.constant 0 : index
    %80 = memref.load %arg2[%c3_84, %c0_85] : memref<4x4xf32, #tpu.memory_space<smem>>
    %81 = vector.broadcast %80 : f32 to vector<1x2x128xf32>
    %82 = arith.mulf %79, %81 : vector<1x2x128xf32>
    %c0_86 = arith.constant 0 : index
    %c1_87 = arith.constant 1 : index
    %c0_88 = arith.constant 0 : index
    %c0_89 = arith.constant 0 : index
    %83 = vector.load %arg3[%c0_86, %c1_87, %c0_88, %c0_89] : memref<1x4x2x128xf32, #tpu.memory_space<vmem>>, vector<1x1x2x128xf32>
    %84 = vector.shape_cast %83 : vector<1x1x2x128xf32> to vector<1x2x128xf32>
    %c3_90 = arith.constant 3 : index
    %c1_91 = arith.constant 1 : index
    %85 = memref.load %arg2[%c3_90, %c1_91] : memref<4x4xf32, #tpu.memory_space<smem>>
    %86 = vector.broadcast %85 : f32 to vector<1x2x128xf32>
    %87 = arith.mulf %84, %86 : vector<1x2x128xf32>
    %88 = arith.addf %82, %87 : vector<1x2x128xf32>
    %c0_92 = arith.constant 0 : index
    %c2_93 = arith.constant 2 : index
    %c0_94 = arith.constant 0 : index
    %c0_95 = arith.constant 0 : index
    %89 = vector.load %arg3[%c0_92, %c2_93, %c0_94, %c0_95] : memref<1x4x2x128xf32, #tpu.memory_space<vmem>>, vector<1x1x2x128xf32>
    %90 = vector.shape_cast %89 : vector<1x1x2x128xf32> to vector<1x2x128xf32>
    %c3_96 = arith.constant 3 : index
    %c2_97 = arith.constant 2 : index
    %91 = memref.load %arg2[%c3_96, %c2_97] : memref<4x4xf32, #tpu.memory_space<smem>>
    %92 = vector.broadcast %91 : f32 to vector<1x2x128xf32>
    %93 = arith.mulf %90, %92 : vector<1x2x128xf32>
    %94 = arith.addf %88, %93 : vector<1x2x128xf32>
    %c0_98 = arith.constant 0 : index
    %c3_99 = arith.constant 3 : index
    %c0_100 = arith.constant 0 : index
    %c0_101 = arith.constant 0 : index
    %95 = vector.load %arg3[%c0_98, %c3_99, %c0_100, %c0_101] : memref<1x4x2x128xf32, #tpu.memory_space<vmem>>, vector<1x1x2x128xf32>
    %96 = vector.shape_cast %95 : vector<1x1x2x128xf32> to vector<1x2x128xf32>
    %c3_102 = arith.constant 3 : index
    %c3_103 = arith.constant 3 : index
    %97 = memref.load %arg2[%c3_102, %c3_103] : memref<4x4xf32, #tpu.memory_space<smem>>
    %98 = vector.broadcast %97 : f32 to vector<1x2x128xf32>
    %99 = arith.mulf %96, %98 : vector<1x2x128xf32>
    %100 = arith.addf %94, %99 : vector<1x2x128xf32>
    %c0_104 = arith.constant 0 : index
    %c3_105 = arith.constant 3 : index
    %c0_106 = arith.constant 0 : index
    %c0_107 = arith.constant 0 : index
    %101 = vector.load %arg4[%c0_104, %c3_105, %c0_106, %c0_107] : memref<1x4x2x128xf32, #tpu.memory_space<vmem>>, vector<1x1x2x128xf32>
    %102 = vector.shape_cast %101 : vector<1x1x2x128xf32> to vector<1x2x128xf32>
    %103 = vector.shape_cast %100 : vector<1x2x128xf32> to vector<1x1x2x128xf32>
    tpu.vector_store %arg4[%c0_104, %c3_105, %c0_106, %c0_107], %103 {strides = array<i32>} : memref<1x4x2x128xf32, #tpu.memory_space<vmem>>, vector<1x1x2x128xf32>,
    return
  }
  func.func @transform_0(%arg0: i32, %arg1: i32) -> (i32, i32) {
    %c0_i32 = arith.constant 0 : i32
    %c0_i32_0 = arith.constant 0 : i32
    %c0_i32_1 = arith.constant 0 : i32
    return %c0_i32, %c0_i32_0 : i32, i32
  }
  func.func @transform_1(%arg0: i32, %arg1: i32) -> (i32, i32, i32, i32) {
    %c0_i32 = arith.constant 0 : i32
    %c0_i32_0 = arith.constant 0 : i32
    %c0_i32_1 = arith.constant 0 : i32
    return %arg0, %c0_i32, %arg1, %c0_i32_0 : i32, i32, i32, i32
  }
  func.func @transform_2(%arg0: i32, %arg1: i32) -> (i32, i32, i32, i32) {
    %c0_i32 = arith.constant 0 : i32
    %c0_i32_0 = arith.constant 0 : i32
    %c0_i32_1 = arith.constant 0 : i32
    return %arg0, %c0_i32, %arg1, %c0_i32_0 : i32, i32, i32, i32
  }
}

</mosaic_0001>

<llo_original>
// kernel: custom-call.2
$region0: #{custom-call.2}
  %s0 = inlined_call_operand.vmem [shape: f32[4,4], index: 0, kind: input, shape index: {}]
  %s1 = inlined_call_operand.vmem [shape: f32[4,4], index: 1, kind: output, shape index: {0}]
  %s2 = inlined_call_operand.hbm [shape: s32[4], index: 2, kind: output, shape index: {1}]
  %s3 = inlined_call_operand.hbm [shape: s32[4], index: 3, kind: output, shape index: {2}]
  %4 = xla_tuple %s1, %s2, %s3
  $region1: #{custom-call.2} parent=0
    #allocation0 [shape = 'u8[4096]{0}', space=vmem, size = 0x1000, scoped, tag = 'operand span for operand 0']
    #allocation1 [shape = 'u8[2048]{0}', space=vmem, size = 0x800, scoped, tag = 'packed  for operand 0']
    #allocation2 [shape = 'u8[4096]{0}', space=vmem, size = 0x1000, scoped, tag = 'operand span for operand 1']
    #allocation3 [shape = 'u8[2048]{0}', space=vmem, size = 0x800, scoped, tag = 'packed  for operand 1']
    #allocation4 [shape = 'u8[4096]{0}', space=vmem, size = 0x1000, scoped, tag = 'operand span for operand 2']
    #allocation5 [shape = 'u8[512]{0}', space=vmem, size = 0x400, scoped, tag = 'packed  for operand 2']
    #allocation6 [shape = 's32[1]{0}', space=sflag, size = 0x4, scoped, tag = 'scoped memory for custom-call.2']
    #allocation7 [shape = 'u8[4096]{0}', space=vmem, size = 0x1000, scoped, tag = 'operand span for operand 3']
    #allocation8 [shape = 'u8[512]{0}', space=vmem, size = 0x400, scoped, tag = 'packed  for operand 3']
    #allocation9 [shape = 's32[1]{0}', space=sflag, size = 0x4, scoped, tag = 'scoped memory for custom-call.2']
    #allocation10 [shape = 's32[4,128]{1,0}', space=vmem, size = 0x1000, scoped, tag = 'scratch for permutations']
    %5 = vsyncpa [#allocation6], 0
    %6 = vsyncpa [#allocation9], 0
    %p8 = scmp.gt.s32.totalorder 4, 0
    // Predicated region
    $region2: #{custom-call.2} parent=1 // pred_check
      %p9 = pneg %p8
    $region3: #{custom-call.2} parent=1 // pred_check_branch
      %11 = sbr.rel (%p9) target = $region5
    $region4: #{custom-call.2} parent=1 // pred_region
      %s12 = sshra.s32 4, 3
      %p13 = scmp.gt.s32.totalorder %s12, 0
      // Predicated region
      $region6: #{custom-call.2} parent=4 // pred_check
        %p14 = pneg %p13
      $region7: #{custom-call.2} parent=4 // pred_check_branch
        %16 = sbr.rel (%p14) target = $region9
      $region8: #{custom-call.2} parent=4 // pred_region
        %s17 = ssub.s32 %s12, 1
        %s18 = smul.u32 %s17, 128
        %s19 = sshra.s32 %s18, 4
        %s20 = scalar_lea.vmem %s0, %s19
        %v21 = vld [vmem:[%s0] sm:$0xff]
        // While loop
        $region10: #{custom-call.2} parent=8 // loop_pre_header
          _
        $region11: #{custom-call.2} parent=8 // loop_header
          %s22 = sphi %s0, %s44
          %s23 = sphi [#allocation1], %s45
          %v24 = vphi %v21, %v46
          %s25 = ssub.s32 %s20, 64
          %p26 = scmp.gt.s32.totalorder %s22, %s25
        $region12: #{custom-call.2} parent=8 // loop_header_branch
          %28 = sbr.rel (%p26) target = $region16
        $region13: #{custom-call.2} parent=8 // loop_body
          %29 = vst [vmem:[%s23] sm:$0xff] %v24
          %v30 = vld [vmem:[%s22 + $0x8] sm:$0xff]
          %31 = vst [vmem:[%s23 + $0x8] sm:$0xff] %v30
          %v32 = vld [vmem:[%s22 + $0x10] sm:$0xff]
          %33 = vst [vmem:[%s23 + $0x10] sm:$0xff] %v32
          %v34 = vld [vmem:[%s22 + $0x18] sm:$0xff]
          %35 = vst [vmem:[%s23 + $0x18] sm:$0xff] %v34
          %v36 = vld [vmem:[%s22 + $0x20] sm:$0xff]
          %37 = vst [vmem:[%s23 + $0x20] sm:$0xff] %v36
          %v38 = vld [vmem:[%s22 + $0x28] sm:$0xff]
          %39 = vst [vmem:[%s23 + $0x28] sm:$0xff] %v38
          %v40 = vld [vmem:[%s22 + $0x30] sm:$0xff]
          %41 = vst [vmem:[%s23 + $0x30] sm:$0xff] %v40
          %v42 = vld [vmem:[%s22 + $0x38] sm:$0xff]
          %43 = vst [vmem:[%s23 + $0x38] sm:$0xff] %v42
        $region14: #{custom-call.2} parent=8 // loop_footer
          %s44 = scalar_lea.vmem %s22, 64
          %s45 = scalar_lea.vmem %s23, 64
          %v46 = vld [vmem:[%s22 + $0x40] sm:$0xff]
        $region15: #{custom-call.2} parent=8 // loop_footer_branch
          %47 = sbr.rel target = $region11
        $region16: #{custom-call.2} parent=8 // loop_exit
          _
        // While loop
        $region17: #{custom-call.2} parent=8 // loop_pre_header
          _
        $region18: #{custom-call.2} parent=8 // loop_header
          %s48 = sphi %s22, %s56
          %s49 = sphi %s23, %s57
          %v50 = vphi %v24, %v50
          %p51 = scmp.gt.s32.totalorder %s48, %s20
        $region19: #{custom-call.2} parent=8 // loop_header_branch
          %53 = sbr.rel (%p51) target = $region23
        $region20: #{custom-call.2} parent=8 // loop_body
          %v54 = vld [vmem:[%s48] sm:$0xff]
          %55 = vst [vmem:[%s49] sm:$0xff] %v54
        $region21: #{custom-call.2} parent=8 // loop_footer
          %s56 = scalar_lea.vmem %s48, 8
          %s57 = scalar_lea.vmem %s49, 8
        $region22: #{custom-call.2} parent=8 // loop_footer_branch
          %58 = sbr.rel target = $region18
        $region23: #{custom-call.2} parent=8 // loop_exit
          _
      $region9: #{custom-call.2} parent=4 // pred_fallthru
        _
      %s59 = sand.u32 4, 7
      %s60 = sshllo.u32 0, %s59
      %s61 = smul.u32 %s12, 128
      %s62 = sshra.s32 %s61, 4
      %s63 = scalar_lea.vmem [#allocation1], %s62
      %s64 = smul.u32 %s12, 128
      %s65 = sshra.s32 %s64, 4
      %s66 = scalar_lea.vmem %s0, %s65
      %v67 = vld [vmem:[%s66] sm:%s60]
      %68 = vst [vmem:[%s63] sm:%s60] %v67
    $region5: #{custom-call.2} parent=1 // pred_fallthru
      _
    %s70 = sshllo.u32 0, 4
    %v71 = vld [vmem:[#allocation1] sm:%s70]
    %72 = vst [vmem:[#allocation0] sm:%s70] %v71
    %v73 = vld [vmem:[#allocation0] sm:$0xff]
    %74 = vst [vmem:[#allocation2] sm:$0xff] %v73
    %75 = vst [vmem:[#allocation4] sm:$0x1] 0
    %v76 = vlaneseq
    %v77 = vshrl.u32 %v76, 7
    %v78 = vmov %v77
    %80 = vst [vmem:[#allocation10] sm:$0xff] %v78
    loop: start=0, step=1, limit=4
    $region25: #{custom-call.2} parent=1 // loop_pre_header
      _
    $region26: #{custom-call.2} parent=1 // loop_header
      %s82 = sphi 0, %s86
      %p83 = scmp.ge.s32.totalorder %s82, 4
    $region27: #{custom-call.2} parent=1 // loop_header_branch
      %85 = sbr.rel (%p83) target = $region31
    $region28: #{custom-call.2} parent=1 // loop_body
      %v87 = vstv %s82
      %v88 = vlaneseq
      %v89 = vshrl.u32 %v88, 7
      %v90 = vmov %v89
      %v91 = vld [vmem:[#allocation2] sm:$0xff]
      %v92 = vand.u32 2147483647, %v91
      %v94 = vstv %s82
      %vm95 = vcmp.ge.s32.totalorder %v90, %v94
      %vm96 = vcmp.lt.s32.totalorder %v90, 4
      %vm97 = vmand %vm95, %vm96
      %vm98 = vcmp.lt.f32.partialorder -inf, %v92
      %vm99 = vmand %vm97, %vm98
      %v100 = vsel %vm99, %v90, %v87
      %v101 = vsel %vm99, %v92, -inf
      %v102 = vrot.slane %v101, 1
      %v103 = vrot.slane %v100, 1
      %vm104 = vcmp.ge.f32.partialorder %v102, %v101
      %v105 = vsel %vm104, %v102, %v101
      %v106 = vsel %vm104, %v103, %v100
      %v107 = vrot.slane %v102, 1
      %v108 = vrot.slane %v103, 1
      %vm109 = vcmp.ge.f32.partialorder %v107, %v105
      %v110 = vsel %vm109, %v107, %v105
      %v111 = vsel %vm109, %v108, %v106
      %v112 = vrot.slane %v107, 1
      %v113 = vrot.slane %v108, 1
      %vm114 = vcmp.ge.f32.partialorder %v112, %v110
      %v115 = vsel %vm114, %v112, %v110
      %v116 = vsel %vm114, %v113, %v111
      %v117 = vrot.slane %v112, 1
      %v118 = vrot.slane %v113, 1
      %vm119 = vcmp.ge.f32.partialorder %v117, %v115
      %v120 = vsel %vm119, %v117, %v115
      %v121 = vsel %vm119, %v118, %v116
      %v122 = vrot.slane %v117, 1
      %v123 = vrot.slane %v118, 1
      %vm124 = vcmp.ge.f32.partialorder %v122, %v120
      %v125 = vsel %vm124, %v122, %v120
      %v126 = vsel %vm124, %v123, %v121
      %v127 = vrot.slane %v122, 1
      %v128 = vrot.slane %v123, 1
      %vm129 = vcmp.ge.f32.partialorder %v127, %v125
      %v130 = vsel %vm129, %v127, %v125
      %v131 = vsel %vm129, %v128, %v126
      %v132 = vrot.slane %v127, 1
      %v133 = vrot.slane %v128, 1
      %vm134 = vcmp.ge.f32.partialorder %v132, %v130
      %v135 = vsel %vm134, %v132, %v130
      %v136 = vsel %vm134, %v133, %v131
      %s137 = ssub.s32 128, %s82
      %138 = vrot.lane.b32.xlu0 %v136, %s137
      %v139 = vpop.permute.xlu0 %138
      %s140 = vtos %v139
      %v141 = vstv %s82
      %v142 = vlaneseq
      %v143 = vand.u32 %v142, 127
      %vm144 = vcmp.eq.s32.totalorder %v143, %v141
      %v145 = vstv %s140
      %v146 = vld [vmem:[#allocation4] ss:$0 sm:$0xff]
      %v147 = vsel %vm144, %v145, %v146
      %148 = vst [vmem:[#allocation4] sm:$0x1] %v147
      %s149 = scalar_lea.vmem [#allocation2], %s82
      %s150 = scalar_lea.vmem [#allocation2], %s140
      %v151 = vld [vmem:[%s149] ss:$0 sm:$0xff]
      %v152 = vld [vmem:[%s150] ss:$0 sm:$0xff]
      %153 = vst [vmem:[%s150] sm:$0x1] %v151
      %154 = vst [vmem:[%s149] sm:$0x1] %v152
      %s155 = scalar_lea.vmem [#allocation10], %s82
      %s156 = scalar_lea.vmem [#allocation10], %s140
      %v157 = vld [vmem:[%s155] ss:$0 sm:$0xff]
      %v158 = vld [vmem:[%s156] ss:$0 sm:$0xff]
      %159 = vst [vmem:[%s156] sm:$0x1] %v157
      %160 = vst [vmem:[%s155] sm:$0x1] %v158
      %vm161 = vcmp.ne.f32.partialorder %v152, 0.0
      %vm162 = vmand %vm144, %vm161
      %v163 = vsel %vm162, %v152, 1.0
      %v164 = vlaneseq
      %v165 = vand.u32 %v164, 127
      %v166 = vstv %s82
      %vm167 = vcmp.gt.s32.totalorder %v165, %v166
      %v168 = vsel %vm167, %v152, 0.0
      %v169 = vlaneseq
      %v170 = vshrl.u32 %v169, 7
      %v171 = vmov %v170
      %v172 = vld [vmem:[#allocation2] sm:$0xff]
      %v174 = vstv %s82
      %vm175 = vcmp.gt.s32.totalorder %v171, %v174
      %v176 = vsel %vm175, %v163, 1.0
      %v177 = vrcp.pop %v176
      %v178 = vmul.f32 %v172, %v177
      %vm179 = vmand %vm175, %vm144
      %v180 = vsel %vm179, %v178, 0.0
      %181 = vadd.xlane.f32.xlu0 %v180
      %v182 = vpop.xlane.xlu0 %181
      %v183 = vmul.f32 %v182, %v168
      %v184 = vsub.f32 %v178, %v183
      %185 = vst [vmem:[#allocation2] sm:$0xff] %v184
    $region29: #{custom-call.2} parent=1 // loop_footer
      %s86 = sadd.s32 1, %s82
    $region30: #{custom-call.2} parent=1 // loop_footer_branch
      %81 = sbr.rel target = $region26
    $region31: #{custom-call.2} parent=1 // loop_exit
      _
    %v186 = vld [vmem:[#allocation10] sm:$0xff]
    %s187 = scalar_lea.vmem [#allocation10], 8
    %s188 = scalar_lea.vmem [#allocation10], 16
    %s189 = scalar_lea.vmem [#allocation10], 24
    %s190 = scalar_lea.vmem [#allocation10], 32
    %s191 = scalar_lea.vmem [#allocation10], 40
    %s192 = scalar_lea.vmem [#allocation10], 48
    %s193 = scalar_lea.vmem [#allocation10], 56
    %s194 = scalar_lea.vmem [#allocation10], 64
    %s195 = scalar_lea.vmem [#allocation10], 72
    %s196 = scalar_lea.vmem [#allocation10], 80
    %s197 = scalar_lea.vmem [#allocation10], 88
    %s198 = scalar_lea.vmem [#allocation10], 96
    %s199 = scalar_lea.vmem [#allocation10], 104
    %s200 = scalar_lea.vmem [#allocation10], 112
    %s201 = scalar_lea.vmem [#allocation10], 120
    %202 = vxpose.xlu0.b32.start [1/16] %v186, 128
    %203 = vxpose.xlu0.b32.cont [2/16] 0, 128
    %204 = vxpose.xlu0.b32.cont [3/16] 0, 128
    %205 = vxpose.xlu0.b32.cont [4/16] 0, 128
    %206 = vxpose.xlu0.b32.cont [5/16] 0, 128
    %207 = vxpose.xlu0.b32.cont [6/16] 0, 128
    %208 = vxpose.xlu0.b32.cont [7/16] 0, 128
    %209 = vxpose.xlu0.b32.cont [8/16] 0, 128
    %210 = vxpose.xlu0.b32.cont [9/16] 0, 128
    %211 = vxpose.xlu0.b32.cont [10/16] 0, 128
    %212 = vxpose.xlu0.b32.cont [11/16] 0, 128
    %213 = vxpose.xlu0.b32.cont [12/16] 0, 128
    %214 = vxpose.xlu0.b32.cont [13/16] 0, 128
    %215 = vxpose.xlu0.b32.cont [14/16] 0, 128
    %216 = vxpose.xlu0.b32.cont [15/16] 0, 128
    %217 = vxpose.xlu0.b32.end [16/16] 0, 128
    %v218 = vpop.trf.xlu0
    %v219 = vpop.trf.xlu0
    %v220 = vpop.trf.xlu0
    %v221 = vpop.trf.xlu0
    %v222 = vpop.trf.xlu0
    %v223 = vpop.trf.xlu0
    %v224 = vpop.trf.xlu0
    %v225 = vpop.trf.xlu0
    %v226 = vpop.trf.xlu0
    %v227 = vpop.trf.xlu0
    %v228 = vpop.trf.xlu0
    %v229 = vpop.trf.xlu0
    %v230 = vpop.trf.xlu0
    %v231 = vpop.trf.xlu0
    %v232 = vpop.trf.xlu0
    %v233 = vpop.trf.xlu0
    %234 = vst [vmem:[#allocation7] sm:$0x1] %v218
    %s236 = sshllo.u32 0, 4
    %v238 = vld [vmem:[#allocation2] sm:%s236]
    %s239 = sshllo.u32 0, 4
    %240 = vst [vmem:[#allocation3] sm:%s239] %v238
    %s242 = sshllo.u32 0, 1
    %v244 = vld [vmem:[#allocation4] sm:%s242]
    %s245 = sshllo.u32 0, 1
    %246 = vst [vmem:[#allocation5] sm:%s245] %v244
    %s248 = sshllo.u32 0, 1
    %v250 = vld [vmem:[#allocation7] sm:%s248]
    %s251 = sshllo.u32 0, 1
    %252 = vst [vmem:[#allocation8] sm:%s251] %v250
    %p254 = scmp.gt.s32.totalorder 4, 0
    // Predicated region
    $region32: #{custom-call.2} parent=1 // pred_check
      %p255 = pneg %p254
    $region33: #{custom-call.2} parent=1 // pred_check_branch
      %257 = sbr.rel (%p255) target = $region35
    $region34: #{custom-call.2} parent=1 // pred_region
      %s258 = sshra.s32 4, 3
      %p259 = scmp.gt.s32.totalorder %s258, 0
      // Predicated region
      $region36: #{custom-call.2} parent=34 // pred_check
        %p260 = pneg %p259
      $region37: #{custom-call.2} parent=34 // pred_check_branch
        %262 = sbr.rel (%p260) target = $region39
      $region38: #{custom-call.2} parent=34 // pred_region
        %s263 = ssub.s32 %s258, 1
        %s264 = smul.u32 %s263, 128
        %s265 = sshra.s32 %s264, 4
        %s266 = scalar_lea.vmem [#allocation3], %s265
        %v267 = vld [vmem:[#allocation3] sm:$0xff]
        // While loop
        $region40: #{custom-call.2} parent=38 // loop_pre_header
          _
        $region41: #{custom-call.2} parent=38 // loop_header
          %s268 = sphi [#allocation3], %s290
          %s269 = sphi %s1, %s291
          %v270 = vphi %v267, %v292
          %s271 = ssub.s32 %s266, 64
          %p272 = scmp.gt.s32.totalorder %s268, %s271
        $region42: #{custom-call.2} parent=38 // loop_header_branch
          %274 = sbr.rel (%p272) target = $region46
        $region43: #{custom-call.2} parent=38 // loop_body
          %275 = vst [vmem:[%s269] sm:$0xff] %v270
          %v276 = vld [vmem:[%s268 + $0x8] sm:$0xff]
          %277 = vst [vmem:[%s269 + $0x8] sm:$0xff] %v276
          %v278 = vld [vmem:[%s268 + $0x10] sm:$0xff]
          %279 = vst [vmem:[%s269 + $0x10] sm:$0xff] %v278
          %v280 = vld [vmem:[%s268 + $0x18] sm:$0xff]
          %281 = vst [vmem:[%s269 + $0x18] sm:$0xff] %v280
          %v282 = vld [vmem:[%s268 + $0x20] sm:$0xff]
          %283 = vst [vmem:[%s269 + $0x20] sm:$0xff] %v282
          %v284 = vld [vmem:[%s268 + $0x28] sm:$0xff]
          %285 = vst [vmem:[%s269 + $0x28] sm:$0xff] %v284
          %v286 = vld [vmem:[%s268 + $0x30] sm:$0xff]
          %287 = vst [vmem:[%s269 + $0x30] sm:$0xff] %v286
          %v288 = vld [vmem:[%s268 + $0x38] sm:$0xff]
          %289 = vst [vmem:[%s269 + $0x38] sm:$0xff] %v288
        $region44: #{custom-call.2} parent=38 // loop_footer
          %s290 = scalar_lea.vmem %s268, 64
          %s291 = scalar_lea.vmem %s269, 64
          %v292 = vld [vmem:[%s268 + $0x40] sm:$0xff]
        $region45: #{custom-call.2} parent=38 // loop_footer_branch
          %293 = sbr.rel target = $region41
        $region46: #{custom-call.2} parent=38 // loop_exit
          _
        // While loop
        $region47: #{custom-call.2} parent=38 // loop_pre_header
          _
        $region48: #{custom-call.2} parent=38 // loop_header
          %s294 = sphi %s268, %s302
          %s295 = sphi %s269, %s303
          %v296 = vphi %v270, %v296
          %p297 = scmp.gt.s32.totalorder %s294, %s266
        $region49: #{custom-call.2} parent=38 // loop_header_branch
          %299 = sbr.rel (%p297) target = $region53
        $region50: #{custom-call.2} parent=38 // loop_body
          %v300 = vld [vmem:[%s294] sm:$0xff]
          %301 = vst [vmem:[%s295] sm:$0xff] %v300
        $region51: #{custom-call.2} parent=38 // loop_footer
          %s302 = scalar_lea.vmem %s294, 8
          %s303 = scalar_lea.vmem %s295, 8
        $region52: #{custom-call.2} parent=38 // loop_footer_branch
          %304 = sbr.rel target = $region48
        $region53: #{custom-call.2} parent=38 // loop_exit
          _
      $region39: #{custom-call.2} parent=34 // pred_fallthru
        _
      %s305 = sand.u32 4, 7
      %s306 = sshllo.u32 0, %s305
      %s307 = smul.u32 %s258, 128
      %s308 = sshra.s32 %s307, 4
      %s309 = scalar_lea.vmem %s1, %s308
      %s310 = smul.u32 %s258, 128
      %s311 = sshra.s32 %s310, 4
      %s312 = scalar_lea.vmem [#allocation3], %s311
      %v313 = vld [vmem:[%s312] sm:%s306]
      %314 = vst [vmem:[%s309] sm:%s306] %v313
    $region35: #{custom-call.2} parent=1 // pred_fallthru
      _
    // Predicated region
    $region54: #{custom-call.2} parent=1 // pred_check
      _
    $region55: #{custom-call.2} parent=1 // pred_check_branch
      %316 = sbr.rel (0) target = $region57
    $region56: #{custom-call.2} parent=1 // pred_region
      %s318 = ssub.s32 16, 16
      %319 = vsyncadd [#allocation6], %s318
      %s320 = sshll.u32 [#allocation5], 4
      %s321 = int_to_ptr.vmem [resolvable:$true] %s320
      %323 = dma.vmem_to_hbm [thread:$0]  %s321, 16, %s2, [#allocation6]
    $region57: #{custom-call.2} parent=1 // pred_fallthru
      _
    // Predicated region
    $region58: #{custom-call.2} parent=1 // pred_check
      _
    $region59: #{custom-call.2} parent=1 // pred_check_branch
      %325 = sbr.rel (0) target = $region61
    $region60: #{custom-call.2} parent=1 // pred_region
      %s327 = ssub.s32 16, 16
      %328 = vsyncadd [#allocation9], %s327
      %s329 = sshll.u32 [#allocation8], 4
      %s330 = int_to_ptr.vmem [resolvable:$true] %s329
      %332 = dma.vmem_to_hbm [thread:$0]  %s330, 16, %s3, [#allocation9]
    $region61: #{custom-call.2} parent=1 // pred_fallthru
      _
    // Predicated region
    $region62: #{custom-call.2} parent=1 // pred_check
      _
    $region63: #{custom-call.2} parent=1 // pred_check_branch
      %334 = sbr.rel (0) target = $region65
    $region64: #{custom-call.2} parent=1 // pred_region
      %335 = dma.done [#allocation6], 16
    $region65: #{custom-call.2} parent=1 // pred_fallthru
      _
    // Predicated region
    $region66: #{custom-call.2} parent=1 // pred_check
      _
    $region67: #{custom-call.2} parent=1 // pred_check_branch
      %337 = sbr.rel (0) target = $region69
    $region68: #{custom-call.2} parent=1 // pred_region
      %338 = dma.done [#allocation9], 16
    $region69: #{custom-call.2} parent=1 // pred_fallthru
      _
    %339 = vsyncpa [#allocation6], 1
    %340 = vsyncpa [#allocation9], 1

// kernel: invertible_convolution_forward.1
$region0: #{invertible_convolution_forward.1}
  #allocation0 [shape = 'u32[]', space=smem, size = 0x4, offset = 0x4, fixed_abs, tag = 'smem constant byte address 0x4 - core index']
  #allocation1 [shape = 'u32[144,128]{1,0:T(1,128)}', space=vmem, size = 0x12000, scoped, tag = 'internal scratch']
  %s0 = inlined_call_operand.vmem [shape: f32[4,4], index: 0, kind: input, shape index: {}]
  %s1 = inlined_call_operand.vmem [shape: f32[2,4,2,128], index: 1, kind: input, shape index: {}]
  %s2 = inlined_call_operand.vmem [shape: f32[2,4,2,128], index: 2, kind: output, shape index: {}]
  %s3 = sld [smem:[#allocation0]]
  $region45: #{invertible_convolution_forward.1} parent=0
    _
  %s5 = ssub.s32 1, %s3
  %s6 = scalar_select 0, %s5, %s3
  $region1: #{invertible_convolution_forward.1} parent=0
    #allocation2 [shape = 'u8[2048]{0}', space=smem, size = 0x800, scoped, tag = 'input window, operand 0, single buffered']
    #allocation3 [shape = 's32[2]{0}', space=sflag, size = 0x8, scoped, tag = 'scoped memory for invertible_convolution_forward.1']
    %7 = vsyncpa [#allocation3], 0
    loop: start=0, step=1, limit=4
    $region2: #{invertible_convolution_forward.1} parent=1 // loop_pre_header
      _
    $region3: #{invertible_convolution_forward.1} parent=1 // loop_header
      %s9 = sphi 0, %s13
      %p10 = scmp.ge.s32.totalorder %s9, 4
      %s16 = sphi 0, %s28
      %s17 = sphi 0, %s24
      %s18 = sphi 0, %s16
      %s19 = sphi 0, %s17
      %s20 = sphi 0, %s18
      %s21 = sphi 0, %s19
      %s29 = sphi 0, %s29
      %s31 = sphi 0, %s29
      %s32 = sphi 0, %s31
      %s46 = sphi 0, %s32
      %s54 = sphi 0, %s56
      %s57 = sphi 0, %s54
      %s58 = sphi 0, %s57
      %s74 = sphi 0, %s58
      %s82 = sphi 0, %s84
      %s85 = sphi 0, %s82
      %s86 = sphi 0, %s85
      %s102 = sphi 0, %s86
    $region4: #{invertible_convolution_forward.1} parent=1 // loop_header_branch
      %12 = sbr.rel (%p10) target = $region8
    $region5: #{invertible_convolution_forward.1} parent=1 // loop_body
      %s14 = ssub.s32 %s9, 1
      %s15 = ssub.s32 %s9, 2
      %s22 = sadd.s32 1, %s17
      %p23 = scmp.ge.s32.totalorder %s22, 1
      %s24 = scalar_select %p23, 0, %s22
      %s25 = sadd.s32 1, %s16
      %s26 = scalar_select %p23, %s25, %s16
      %p27 = scmp.ge.s32.totalorder %s26, 2
      %s28 = scalar_select %p27, 0, %s26
      %s30 = sadd.s32 %s29, 1
      %p33 = scmp.eq.s32.totalorder %s9, 1
      %p34 = scmp.ne.s32.totalorder %s29, %s31
      %p35 = scmp.eq.s32.totalorder %s9, 0
      %p36 = por %p34, %p35
      %p37 = scmp.ne.s32.totalorder %s29, %s31
      %p38 = scmp.eq.s32.totalorder %s14, 1
      %p39 = por %p37, %p38
      %p40 = scmp.ne.s32.totalorder %s31, %s32
      %p41 = scmp.eq.s32.totalorder %s14, 0
      %p42 = por %p40, %p41
      %p43 = scmp.ne.s32.totalorder %s31, %s32
      %p44 = scmp.eq.s32.totalorder %s15, 1
      %p45 = por %p43, %p44
      %p47 = scmp.ne.s32.totalorder %s32, %s46
      %p48 = scmp.eq.s32.totalorder %s15, 0
      %p49 = por %p47, %p48
      %s50 = ssub.s32 %s16, %s28
      %s51 = ssub.s32 %s17, %s24
      %s52 = sor.u32 %s50, %s51
      %p53 = scmp.eq.s32.totalorder %s52, 0
      %s55 = sadd.s32 %s54, 1
      %s56 = scalar_select %p53, %s54, %s55
      %p59 = pneg %p53
      %p60 = scmp.eq.s32.totalorder %s9, 1
      %p61 = por %p59, %p60
      %p62 = scmp.ne.s32.totalorder %s54, %s57
      %p63 = scmp.eq.s32.totalorder %s9, 0
      %p64 = por %p62, %p63
      %p65 = scmp.ne.s32.totalorder %s54, %s57
      %p66 = scmp.eq.s32.totalorder %s14, 1
      %p67 = por %p65, %p66
      %p68 = scmp.ne.s32.totalorder %s57, %s58
      %p69 = scmp.eq.s32.totalorder %s14, 0
      %p70 = por %p68, %p69
      %p71 = scmp.ne.s32.totalorder %s57, %s58
      %p72 = scmp.eq.s32.totalorder %s15, 1
      %p73 = por %p71, %p72
      %p75 = scmp.ne.s32.totalorder %s58, %s74
      %p76 = scmp.eq.s32.totalorder %s15, 0
      %p77 = por %p75, %p76
      %s78 = ssub.s32 %s16, %s28
      %s79 = ssub.s32 %s17, %s24
      %s80 = sor.u32 %s78, %s79
      %p81 = scmp.eq.s32.totalorder %s80, 0
      %s83 = sadd.s32 %s82, 1
      %s84 = scalar_select %p81, %s82, %s83
      %p87 = pneg %p81
      %p88 = scmp.eq.s32.totalorder %s9, 1
      %p89 = por %p87, %p88
      %p90 = scmp.ne.s32.totalorder %s82, %s85
      %p91 = scmp.eq.s32.totalorder %s9, 0
      %p92 = por %p90, %p91
      %p93 = scmp.ne.s32.totalorder %s82, %s85
      %p94 = scmp.eq.s32.totalorder %s14, 1
      %p95 = por %p93, %p94
      %p96 = scmp.ne.s32.totalorder %s85, %s86
      %p97 = scmp.eq.s32.totalorder %s14, 0
      %p98 = por %p96, %p97
      %p99 = scmp.ne.s32.totalorder %s85, %s86
      %p100 = scmp.eq.s32.totalorder %s15, 1
      %p101 = por %p99, %p100
      %p103 = scmp.ne.s32.totalorder %s86, %s102
      %p104 = scmp.eq.s32.totalorder %s15, 0
      %p105 = por %p103, %p104
      %p106 = scmp.le.s32.totalorder 1, %s9
      %p107 = scmp.lt.s32.totalorder %s9, 3
      %p108 = pnand %p106, %p107
      %p109 = pneg %p108
      // Predicated region
      $region9: #{invertible_convolution_forward.1} parent=5 // pred_check
        _
      $region10: #{invertible_convolution_forward.1} parent=5 // pred_check_branch
        %111 = sbr.rel (%p108) target = $region12
      $region11: #{invertible_convolution_forward.1} parent=5 // pred_region
        %s112 = ssub.s32 %s9, 1
        // Predicated region
        $region13: #{invertible_convolution_forward.1} parent=11 // pred_check
          %p113 = pneg %p42
        $region14: #{invertible_convolution_forward.1} parent=11 // pred_check_branch
          %115 = sbr.rel (%p113) target = $region16
        $region15: #{invertible_convolution_forward.1} parent=11 // pred_region
          %s117 = ssub.s32 64, 64
          %118 = vsyncadd [#allocation3], %s117
          %s120 = sshll.u32 %s0, 4
          %s121 = int_to_ptr.vmem [resolvable:$true] %s120
          %123 = dma.vmem_to_smem %s121, 64, [#allocation2], [#allocation3]
        $region16: #{invertible_convolution_forward.1} parent=11 // pred_fallthru
          _
      $region12: #{invertible_convolution_forward.1} parent=5 // pred_fallthru
        _
      %p124 = scmp.lt.s32.totalorder %s9, 2
      // Predicated region
      $region17: #{invertible_convolution_forward.1} parent=5 // pred_check
        %p125 = pneg %p124
      $region18: #{invertible_convolution_forward.1} parent=5 // pred_check_branch
        %127 = sbr.rel (%p125) target = $region20
      $region19: #{invertible_convolution_forward.1} parent=5 // pred_region
        // Predicated region
        $region21: #{invertible_convolution_forward.1} parent=19 // pred_check
          %p128 = pneg %p64
        $region22: #{invertible_convolution_forward.1} parent=19 // pred_check_branch
          %130 = sbr.rel (%p128) target = $region24
        $region23: #{invertible_convolution_forward.1} parent=19 // pred_region
          %p131 = scmp.lt.s32.totalorder %s16, 1
          %s132 = scalar_select %p131, %s16, 1
          %p133 = scmp.lt.s32.totalorder %s17, 0
          %s134 = scalar_select %p133, %s17, 0
          %s135 = smul.addr %s132, 4
          %s136 = sadd.s32 %s134, %s135
          %s137 = smul.addr %s136, 2
          %s138 = scalar_lea.vmem %s1, %s137
        $region24: #{invertible_convolution_forward.1} parent=19 // pred_fallthru
          _
      $region20: #{invertible_convolution_forward.1} parent=5 // pred_fallthru
        _
      %p139 = scmp.le.s32.totalorder 1, %s9
      %p140 = scmp.lt.s32.totalorder %s9, 3
      %p141 = pnand %p139, %p140
      %p142 = pneg %p141
      // Predicated region
      $region25: #{invertible_convolution_forward.1} parent=5 // pred_check
        _
      $region26: #{invertible_convolution_forward.1} parent=5 // pred_check_branch
        %144 = sbr.rel (%p141) target = $region28
      $region27: #{invertible_convolution_forward.1} parent=5 // pred_region
        %s145 = ssub.s32 %s9, 1
        // Predicated region
        $region29: #{invertible_convolution_forward.1} parent=27 // pred_check
          %p146 = pneg %p42
        $region30: #{invertible_convolution_forward.1} parent=27 // pred_check_branch
          %148 = sbr.rel (%p146) target = $region32
        $region31: #{invertible_convolution_forward.1} parent=27 // pred_region
          %149 = dma.done [#allocation3], 64
        $region32: #{invertible_convolution_forward.1} parent=27 // pred_fallthru
          _
        %150 = sfence
        %p151 = pneg %p42
        %p152 = pneg %p39
        %p153 = scmp.lt.s32.totalorder %s18, 1
        %s154 = scalar_select %p153, %s18, 1
        %p155 = scmp.lt.s32.totalorder %s19, 0
        %s156 = scalar_select %p155, %s19, 0
        %s157 = smul.addr %s154, 4
        %s158 = sadd.s32 %s156, %s157
        %s159 = smul.addr %s158, 2
        %s160 = scalar_lea.vmem %s1, %s159
        %p161 = pneg %p70
        %p162 = pneg %p67
        %p163 = pneg %p98
        %p164 = pneg %p95
        %p165 = scmp.lt.s32.totalorder %s18, 1
        %s166 = scalar_select %p165, %s18, 1
        %p167 = scmp.lt.s32.totalorder %s19, 0
        %s168 = scalar_select %p167, %s19, 0
        %s169 = smul.addr %s166, 4
        %s170 = sadd.s32 %s168, %s169
        %s171 = smul.addr %s170, 2
        %s172 = scalar_lea.vmem %s2, %s171
        %p173 = scmp.lt.s32.totalorder %s18, 1
        %s174 = scalar_select %p173, %s18, 1
        %p175 = scmp.lt.s32.totalorder %s19, 0
        %s176 = scalar_select %p175, %s19, 0
        %s177 = smul.addr %s174, 4
        %s178 = sadd.s32 %s176, %s177
        %s179 = smul.addr %s178, 2
        %s180 = scalar_lea.vmem %s1, %s179
        %p181 = scmp.lt.s32.totalorder %s18, 1
        %s182 = scalar_select %p181, %s18, 1
        %p183 = scmp.lt.s32.totalorder %s19, 0
        %s184 = scalar_select %p183, %s19, 0
        %s185 = smul.addr %s182, 4
        %s186 = sadd.s32 %s184, %s185
        %s187 = smul.addr %s186, 2
        %s188 = scalar_lea.vmem %s2, %s187
        %v189 = vld [vmem:[%s180] sm:$0x3]
        %s190 = sld [smem:[#allocation2]]
        %v191 = vstv %s190
        %v192 = vmul.f32 %v189, %v191
        %s193 = scalar_lea.vmem %s180, 2
        %v194 = vld [vmem:[%s193] sm:$0x3]
        %s195 = sld [smem:[#allocation2 + $0x1]]
        %v196 = vstv %s195
        %v197 = vmul.f32 %v194, %v196
        %v198 = vadd.f32 %v192, %v197
        %s199 = scalar_lea.vmem %s180, 4
        %v200 = vld [vmem:[%s199] sm:$0x3]
        %s201 = sld [smem:[#allocation2 + $0x2]]
        %v202 = vstv %s201
        %v203 = vmul.f32 %v200, %v202
        %v204 = vadd.f32 %v198, %v203
        %s205 = scalar_lea.vmem %s180, 6
        %v206 = vld [vmem:[%s205] sm:$0x3]
        %s207 = sld [smem:[#allocation2 + $0x3]]
        %v208 = vstv %s207
        %v209 = vmul.f32 %v206, %v208
        %v210 = vadd.f32 %v204, %v209
        %211 = vst [vmem:[%s188] sm:$0x3] %v210
        %v212 = vld [vmem:[%s180] sm:$0x3]
        %s213 = sld [smem:[#allocation2 + $0x80]]
        %v214 = vstv %s213
        %v215 = vmul.f32 %v212, %v214
        %v216 = vld [vmem:[%s193] sm:$0x3]
        %s217 = sld [smem:[#allocation2 + $0x81]]
        %v218 = vstv %s217
        %v219 = vmul.f32 %v216, %v218
        %v220 = vadd.f32 %v215, %v219
        %v221 = vld [vmem:[%s199] sm:$0x3]
        %s222 = sld [smem:[#allocation2 + $0x82]]
        %v223 = vstv %s222
        %v224 = vmul.f32 %v221, %v223
        %v225 = vadd.f32 %v220, %v224
        %v226 = vld [vmem:[%s205] sm:$0x3]
        %s227 = sld [smem:[#allocation2 + $0x83]]
        %v228 = vstv %s227
        %v229 = vmul.f32 %v226, %v228
        %v230 = vadd.f32 %v225, %v229
        %s231 = scalar_lea.vmem %s188, 2
        %232 = vst [vmem:[%s231] sm:$0x3] %v230
        %v233 = vld [vmem:[%s180] sm:$0x3]
        %s234 = sld [smem:[#allocation2 + $0x100]]
        %v235 = vstv %s234
        %v236 = vmul.f32 %v233, %v235
        %v237 = vld [vmem:[%s193] sm:$0x3]
        %s238 = sld [smem:[#allocation2 + $0x101]]
        %v239 = vstv %s238
        %v240 = vmul.f32 %v237, %v239
        %v241 = vadd.f32 %v236, %v240
        %v242 = vld [vmem:[%s199] sm:$0x3]
        %s243 = sld [smem:[#allocation2 + $0x102]]
        %v244 = vstv %s243
        %v245 = vmul.f32 %v242, %v244
        %v246 = vadd.f32 %v241, %v245
        %v247 = vld [vmem:[%s205] sm:$0x3]
        %s248 = sld [smem:[#allocation2 + $0x103]]
        %v249 = vstv %s248
        %v250 = vmul.f32 %v247, %v249
        %v251 = vadd.f32 %v246, %v250
        %s252 = scalar_lea.vmem %s188, 4
        %253 = vst [vmem:[%s252] sm:$0x3] %v251
        %v254 = vld [vmem:[%s180] sm:$0x3]
        %s255 = sld [smem:[#allocation2 + $0x180]]
        %v256 = vstv %s255
        %v257 = vmul.f32 %v254, %v256
        %v258 = vld [vmem:[%s193] sm:$0x3]
        %s259 = sld [smem:[#allocation2 + $0x181]]
        %v260 = vstv %s259
        %v261 = vmul.f32 %v258, %v260
        %v262 = vadd.f32 %v257, %v261
        %v263 = vld [vmem:[%s199] sm:$0x3]
        %s264 = sld [smem:[#allocation2 + $0x182]]
        %v265 = vstv %s264
        %v266 = vmul.f32 %v263, %v265
        %v267 = vadd.f32 %v262, %v266
        %v268 = vld [vmem:[%s205] sm:$0x3]
        %s269 = sld [smem:[#allocation2 + $0x183]]
        %v270 = vstv %s269
        %v271 = vmul.f32 %v268, %v270
        %v272 = vadd.f32 %v267, %v271
        %s273 = scalar_lea.vmem %s188, 6
        %274 = vst [vmem:[%s273] sm:$0x3] %v272
        %p275 = scmp.lt.s32.totalorder %s18, 1
        %s276 = scalar_select %p275, %s18, 1
        %p277 = scmp.lt.s32.totalorder %s19, 0
        %s278 = scalar_select %p277, %s19, 0
        %s279 = smul.addr %s276, 4
        %s280 = sadd.s32 %s278, %s279
        %s281 = smul.addr %s280, 2
        %s282 = scalar_lea.vmem %s2, %s281
        // Predicated region
        $region33: #{invertible_convolution_forward.1} parent=27 // pred_check
          %p283 = pneg %p95
        $region34: #{invertible_convolution_forward.1} parent=27 // pred_check_branch
          %285 = sbr.rel (%p283) target = $region36
        $region35: #{invertible_convolution_forward.1} parent=27 // pred_region
          _
        $region36: #{invertible_convolution_forward.1} parent=27 // pred_fallthru
          _
      $region28: #{invertible_convolution_forward.1} parent=5 // pred_fallthru
        _
      %p286 = scmp.le.s32.totalorder 2, %s9
      // Predicated region
      $region37: #{invertible_convolution_forward.1} parent=5 // pred_check
        %p287 = pneg %p286
      $region38: #{invertible_convolution_forward.1} parent=5 // pred_check_branch
        %289 = sbr.rel (%p287) target = $region40
      $region39: #{invertible_convolution_forward.1} parent=5 // pred_region
        %s290 = ssub.s32 %s9, 2
        // Predicated region
        $region41: #{invertible_convolution_forward.1} parent=39 // pred_check
          %p291 = pneg %p101
        $region42: #{invertible_convolution_forward.1} parent=39 // pred_check_branch
          %293 = sbr.rel (%p291) target = $region44
        $region43: #{invertible_convolution_forward.1} parent=39 // pred_region
          %p294 = scmp.lt.s32.totalorder %s20, 1
          %s295 = scalar_select %p294, %s20, 1
          %p296 = scmp.lt.s32.totalorder %s21, 0
          %s297 = scalar_select %p296, %s21, 0
          %s298 = smul.addr %s295, 4
          %s299 = sadd.s32 %s297, %s298
          %s300 = smul.addr %s299, 2
          %s301 = scalar_lea.vmem %s2, %s300
        $region44: #{invertible_convolution_forward.1} parent=39 // pred_fallthru
          _
      $region40: #{invertible_convolution_forward.1} parent=5 // pred_fallthru
        _
    $region6: #{invertible_convolution_forward.1} parent=1 // loop_footer
      %s13 = sadd.s32 1, %s9
    $region7: #{invertible_convolution_forward.1} parent=1 // loop_footer_branch
      %8 = sbr.rel target = $region3
    $region8: #{invertible_convolution_forward.1} parent=1 // loop_exit
      _
    %302 = vsyncpa [#allocation3], 1
    %s303 = scalar_lea.sflag [#allocation3], 1
    %304 = vsyncpa %s303, 1

</llo_original>
